<compile_context>
chip_gen: v6e
topology: v6e:2x2x1
jax: 0.10.0
libtpu: 0.0.40
codegen_flags: <defaults>
</compile_context>

<pallas_src>
import jax
import jax.numpy as jnp
from jax.experimental import pallas as pl
from jax.experimental.pallas import tpu as pltpu

EPS = 1e-5  # nn.InstanceNorm2d default

# Keep f32 matmul operands for exact fidelity to the PyTorch reference; cast
# to bfloat16 here (keeping preferred_element_type=f32) when the layer is
# large enough to be MXU-bound on v6e/v7x.
MATMUL_DTYPE = jnp.float32


# ---------------------------------------------------------------------------
# Fused ConvBlock kernel: conv3x3 -> InstanceNorm -> ReLU, twice, in VMEM.
# ---------------------------------------------------------------------------
def _make_conv_block_kernel(H, W):
    HW = H * W

    def kernel(x_ref, w1_ref, w2_ref, o_ref):
        # x_ref : (1, Cin, Lp)   H-padded, flattened input, Lp = (H+2)*W + 2
        # w1_ref: (Cout, 9*Cin)  tap-major weights, row index = (ky*3+kx)*C + c
        # w2_ref: (Cout, 9*Cout)
        # o_ref : (1, Cout, HW)
        #
        # Border masks (hoisted, computed once per grid step): the flat-shift
        # trick wraps across row boundaries, so the kx=0 / kx=2 taps must be
        # zeroed at the left / right image columns (they are the zero padding).
        col = jax.lax.broadcasted_iota(jnp.int32, (1, HW), 1) % W
        not_left = col != 0
        not_right = col != (W - 1)

        def conv_in_relu(x_flat, w2d):
            # x_flat: (C, Lp) zero-padded flat activation (f32)
            taps = []
            for ky in range(3):
                for kx in range(3):
                    off = ky * W + kx
                    t = x_flat[:, off:off + HW]          # static lane slice
                    if kx == 0:
                        t = jnp.where(not_left, t, 0.0)
                    elif kx == 2:
                        t = jnp.where(not_right, t, 0.0)
                    taps.append(t)
            cols = jnp.concatenate(taps, axis=0)         # (9*C, HW), VMEM only
            y = jnp.dot(w2d.astype(MATMUL_DTYPE), cols.astype(MATMUL_DTYPE),
                        preferred_element_type=jnp.float32)   # one MXU matmul
            # InstanceNorm2d(affine=False): per-(batch,channel) spatial stats,
            # biased variance, eps=1e-5.  (Conv bias would cancel here.)
            mean = jnp.mean(y, axis=-1, keepdims=True)
            yc = y - mean
            var = jnp.mean(yc * yc, axis=-1, keepdims=True)
            y = yc * jax.lax.rsqrt(var + EPS)
            return jnp.maximum(y, 0.0)                   # ReLU; Dropout2d = id

        y1 = conv_in_relu(x_ref[0], w1_ref[...])         # (Cout, HW)

        # Re-pad the intermediate activation directly in VMEM (no HBM trip):
        # [1 extra zero + top zero row] + y1 + [bottom zero row + 1 extra zero]
        zpad = jnp.zeros((y1.shape[0], W + 1), dtype=y1.dtype)
        y1p = jnp.concatenate([zpad, y1, zpad], axis=1)  # (Cout, Lp)

        o_ref[0] = conv_in_relu(y1p, w2_ref[...])

    return kernel


# ---------------------------------------------------------------------------
# Wrapper: layout-only glue + single fused pallas_call per ConvBlock.
# ---------------------------------------------------------------------------
def conv_block(x, params):
    """x: (B, Cin, H, W); params = ((w1, b1), (w2, b2)) -> (B, Cout, H, W).

    Biases are accepted for parameter-shape fidelity but are not used: they
    are exactly cancelled by the parameter-free InstanceNorm that follows.
    """
    (w1, _b1), (w2, _b2) = params
    B, Cin, H, W = x.shape
    Cout = w1.shape[0]
    HW = H * W
    Lp = (H + 2) * W + 2

    # Layout-only glue in XLA (~1.1x input bytes, no 9x im2col blow-up):
    # pad rows (H) with zeros, flatten spatial, add one zero on each flat end.
    xp = jnp.pad(x, ((0, 0), (0, 0), (1, 1), (0, 0)))      # (B, Cin, H+2, W)
    xf = xp.reshape(B, Cin, (H + 2) * W)
    xf = jnp.pad(xf, ((0, 0), (0, 0), (1, 1)))             # (B, Cin, Lp)

    # Tap-major 2-D weights so each conv is a single K = 9*C matmul.
    w1_2d = jnp.transpose(w1, (0, 2, 3, 1)).reshape(Cout, 9 * Cin)
    w2_2d = jnp.transpose(w2, (0, 2, 3, 1)).reshape(Cout, 9 * Cout)

    out = pl.pallas_call(
        _make_conv_block_kernel(H, W),
        out_shape=jax.ShapeDtypeStruct((B, Cout, HW), jnp.float32),
        grid_spec=pltpu.PrefetchScalarGridSpec(
            num_scalar_prefetch=0,
            grid=(B,),
            in_specs=[
                pl.BlockSpec((1, Cin, Lp), lambda i: (i, 0, 0)),
                pl.BlockSpec((Cout, 9 * Cin), lambda i: (0, 0)),
                pl.BlockSpec((Cout, 9 * Cout), lambda i: (0, 0)),
            ],
            out_specs=pl.BlockSpec((1, Cout, HW), lambda i: (i, 0, 0)),
        ),
        compiler_params=pltpu.CompilerParams(
            dimension_semantics=("parallel",)),
    )(xf, w1_2d, w2_2d)
    return out.reshape(B, Cout, H, W)


# ---------------------------------------------------------------------------
# Pure-JAX reference (mirrors the PyTorch module) for a correctness check.
# ---------------------------------------------------------------------------
def conv_block_ref(x, params):
    def step(h, w, b):
        y = jax.lax.conv_general_dilated(
            h, w, window_strides=(1, 1), padding=((1, 1), (1, 1)),
            dimension_numbers=("NCHW", "OIHW", "NCHW"))
        y = y + b[None, :, None, None]
        mean = jnp.mean(y, axis=(2, 3), keepdims=True)
        var = jnp.var(y, axis=(2, 3), keepdims=True)      # biased, like IN2d
        y = (y - mean) * jax.lax.rsqrt(var + EPS)
        return jnp.maximum(y, 0.0)

    (w1, b1), (w2, b2) = params
    return step(step(x, w1, b1), w2, b2)


# ---------------------------------------------------------------------------
if __name__ == "__main__":
    B, in_chans, out_chans, H, W = 2, 4, 8, 16, 16
    drop_prob = 0.0  # Dropout2d is identity in eval mode

    key = jax.random.PRNGKey(0)
    kx, k1, k2, k3, k4 = jax.random.split(key, 5)

    def uinit(k, shape, fan_in):
        bound = 1.0 / (fan_in ** 0.5)
        return jax.random.uniform(k, shape, jnp.float32, -bound, bound)

    params = (
        (uinit(k1, (out_chans, in_chans, 3, 3), in_chans * 9),
         uinit(k2, (out_chans,), in_chans * 9)),
        (uinit(k3, (out_chans, out_chans, 3, 3), out_chans * 9),
         uinit(k4, (out_chans,), out_chans * 9)),
    )
    x = jax.random.normal(kx, (B, in_chans, H, W), jnp.float32)

    out = jax.jit(conv_block)(x, params)
    out = jax.block_until_ready(out)

    assert out.shape == (B, out_chans, H, W), out.shape
    assert bool(jnp.all(jnp.isfinite(out)))

    ref = conv_block_ref(x, params)
    max_err = float(jnp.max(jnp.abs(out - ref)))
    assert max_err < 2e-2, f"max abs error vs reference: {max_err}"

    print("KERNEL_OK")
</pallas_src>

<mosaic_0001>
module attributes {stable_mosaic.version = 11 : i64} {
  func.func @kernel(%arg0: i32, %arg1: memref<1x4x290xf32, #tpu.memory_space<vmem>>, %arg2: memref<8x36xf32, #tpu.memory_space<vmem>>, %arg3: memref<8x72xf32, #tpu.memory_space<vmem>>, %arg4: memref<1x8x256xf32, #tpu.memory_space<vmem>>) attributes {dimension_semantics = [#tpu.dimension_semantics<parallel>], iteration_bounds = array<i64: 2>, scalar_prefetch = 0 : i64, scratch_operands = 0 : i64, tpu.core_type = #tpu.core_type<tc>, window_params = [{transform_indices = @transform_0, window_bounds = array<i64: 1, 4, 290>}, {pipeline_mode = #tpu.pipeline_mode<synchronous>, transform_indices = @transform_1, window_bounds = array<i64: 8, 36>}, {pipeline_mode = #tpu.pipeline_mode<synchronous>, transform_indices = @transform_2, window_bounds = array<i64: 8, 72>}, {transform_indices = @transform_3, window_bounds = array<i64: 1, 8, 256>}]} {
    %0 = tpu.iota {dimensions = array<i32: 1>} : vector<1x256xi32>
    %c16_i32 = arith.constant 16 : i32
    %c0_i32 = arith.constant 0 : i32
    %1 = arith.cmpi eq, %c16_i32, %c0_i32 : i32
    %c1_i32 = arith.constant 1 : i32
    %2 = arith.select %1, %c1_i32, %c16_i32 : i32
    %3 = vector.broadcast %2 : i32 to vector<1x256xi32>
    %4 = arith.remsi %0, %3 : vector<1x256xi32>
    %c0_i32_0 = arith.constant 0 : i32
    %5 = vector.broadcast %c0_i32_0 : i32 to vector<1x256xi32>
    %6 = arith.cmpi ne, %4, %5 : vector<1x256xi32>
    %c0_i32_1 = arith.constant 0 : i32
    %7 = vector.broadcast %c0_i32_1 : i32 to vector<1x256xi32>
    %8 = arith.cmpi slt, %4, %7 : vector<1x256xi32>
    %c0_i32_2 = arith.constant 0 : i32
    %9 = arith.cmpi slt, %2, %c0_i32_2 : i32
    %10 = vector.broadcast %9 : i1 to vector<1x256xi1>
    %11 = vector.broadcast %10 : vector<1x256xi1> to vector<1x256xi1>
    %12 = arith.xori %8, %11 : vector<1x256xi1>
    %13 = arith.andi %12, %6 : vector<1x256xi1>
    %14 = vector.broadcast %2 : i32 to vector<1x256xi32>
    %15 = arith.addi %4, %14 : vector<1x256xi32>
    %16 = arith.select %13, %15, %4 : vector<1x256xi1>, vector<1x256xi32>
    %c0_i32_3 = arith.constant 0 : i32
    %17 = vector.broadcast %c0_i32_3 : i32 to vector<1x256xi32>
    %18 = arith.cmpi ne, %16, %17 : vector<1x256xi32>
    %c15_i32 = arith.constant 15 : i32
    %19 = vector.broadcast %c15_i32 : i32 to vector<1x256xi32>
    %20 = arith.cmpi ne, %16, %19 : vector<1x256xi32>
    %c0 = arith.constant 0 : index
    %c0_4 = arith.constant 0 : index
    %c0_5 = arith.constant 0 : index
    %21 = vector.load %arg1[%c0, %c0_4, %c0_5] : memref<1x4x290xf32, #tpu.memory_space<vmem>>, vector<1x4x290xf32>
    %22 = vector.shape_cast %21 : vector<1x4x290xf32> to vector<4x290xf32>
    %c0_6 = arith.constant 0 : index
    %c0_7 = arith.constant 0 : index
    %23 = vector.load %arg2[%c0_6, %c0_7] : memref<8x36xf32, #tpu.memory_space<vmem>>, vector<8x36xf32>
    %24 = vector.extract_strided_slice %22 {offsets = [0, 0], sizes = [4, 256], strides = [1, 1]} : vector<4x290xf32> to vector<4x256xf32>
    %cst = arith.constant 0.000000e+00 : f32
    %25 = vector.shape_cast %18 : vector<1x256xi1> to vector<1x256xi1>
    %26 = vector.broadcast %25 : vector<1x256xi1> to vector<4x256xi1>
    %27 = vector.broadcast %cst : f32 to vector<4x256xf32>
    %28 = arith.select %26, %24, %27 : vector<4x256xi1>, vector<4x256xf32>
    %29 = vector.extract_strided_slice %22 {offsets = [0, 1], sizes = [4, 256], strides = [1, 1]} : vector<4x290xf32> to vector<4x256xf32>
    %30 = vector.extract_strided_slice %22 {offsets = [0, 2], sizes = [4, 256], strides = [1, 1]} : vector<4x290xf32> to vector<4x256xf32>
    %cst_8 = arith.constant 0.000000e+00 : f32
    %31 = vector.shape_cast %20 : vector<1x256xi1> to vector<1x256xi1>
    %32 = vector.broadcast %31 : vector<1x256xi1> to vector<4x256xi1>
    %33 = vector.broadcast %cst_8 : f32 to vector<4x256xf32>
    %34 = arith.select %32, %30, %33 : vector<4x256xi1>, vector<4x256xf32>
    %35 = vector.extract_strided_slice %22 {offsets = [0, 16], sizes = [4, 256], strides = [1, 1]} : vector<4x290xf32> to vector<4x256xf32>
    %cst_9 = arith.constant 0.000000e+00 : f32
    %36 = vector.shape_cast %18 : vector<1x256xi1> to vector<1x256xi1>
    %37 = vector.broadcast %36 : vector<1x256xi1> to vector<4x256xi1>
    %38 = vector.broadcast %cst_9 : f32 to vector<4x256xf32>
    %39 = arith.select %37, %35, %38 : vector<4x256xi1>, vector<4x256xf32>
    %40 = vector.extract_strided_slice %22 {offsets = [0, 17], sizes = [4, 256], strides = [1, 1]} : vector<4x290xf32> to vector<4x256xf32>
    %41 = vector.extract_strided_slice %22 {offsets = [0, 18], sizes = [4, 256], strides = [1, 1]} : vector<4x290xf32> to vector<4x256xf32>
    %cst_10 = arith.constant 0.000000e+00 : f32
    %42 = vector.shape_cast %20 : vector<1x256xi1> to vector<1x256xi1>
    %43 = vector.broadcast %42 : vector<1x256xi1> to vector<4x256xi1>
    %44 = vector.broadcast %cst_10 : f32 to vector<4x256xf32>
    %45 = arith.select %43, %41, %44 : vector<4x256xi1>, vector<4x256xf32>
    %46 = vector.extract_strided_slice %22 {offsets = [0, 32], sizes = [4, 256], strides = [1, 1]} : vector<4x290xf32> to vector<4x256xf32>
    %cst_11 = arith.constant 0.000000e+00 : f32
    %47 = vector.shape_cast %18 : vector<1x256xi1> to vector<1x256xi1>
    %48 = vector.broadcast %47 : vector<1x256xi1> to vector<4x256xi1>
    %49 = vector.broadcast %cst_11 : f32 to vector<4x256xf32>
    %50 = arith.select %48, %46, %49 : vector<4x256xi1>, vector<4x256xf32>
    %51 = vector.extract_strided_slice %22 {offsets = [0, 33], sizes = [4, 256], strides = [1, 1]} : vector<4x290xf32> to vector<4x256xf32>
    %52 = vector.extract_strided_slice %22 {offsets = [0, 34], sizes = [4, 256], strides = [1, 1]} : vector<4x290xf32> to vector<4x256xf32>
    %cst_12 = arith.constant 0.000000e+00 : f32
    %53 = vector.shape_cast %20 : vector<1x256xi1> to vector<1x256xi1>
    %54 = vector.broadcast %53 : vector<1x256xi1> to vector<4x256xi1>
    %55 = vector.broadcast %cst_12 : f32 to vector<4x256xf32>
    %56 = arith.select %54, %52, %55 : vector<4x256xi1>, vector<4x256xf32>
    %57 = tpu.concatenate %28, %29, %34, %39, %40, %45, %50, %51, %56 in 0 : vector<4x256xf32>, vector<4x256xf32>, vector<4x256xf32>, vector<4x256xf32>, vector<4x256xf32>, vector<4x256xf32>, vector<4x256xf32>, vector<4x256xf32>, vector<4x256xf32> -> vector<36x256xf32>
    %cst_13 = arith.constant dense<0.000000e+00> : vector<8x256xf32>
    %58 = tpu.matmul %23, %57, %cst_13 {dimension_numbers = #tpu.dot_dimension_numbers<[1], [0], [0], [1], [0, 0, 1, 1], [], []>} : vector<8x36xf32>, vector<36x256xf32>, vector<8x256xf32> -> vector<8x256xf32>
    %cst_14 = arith.constant dense<0.000000e+00> : vector<8xf32>
    %59 = vector.multi_reduction <add>, %58, %cst_14 [1] : vector<8x256xf32> to vector<8xf32>
    %60 = vector.shape_cast %59 : vector<8xf32> to vector<8x1xf32>
    %cst_15 = arith.constant 2.560000e+02 : f32
    %61 = vector.broadcast %cst_15 : f32 to vector<8x1xf32>
    %62 = arith.divf %60, %61 : vector<8x1xf32>
    %63 = vector.broadcast %62 : vector<8x1xf32> to vector<8x256xf32>
    %64 = arith.subf %58, %63 : vector<8x256xf32>
    %65 = arith.mulf %64, %64 : vector<8x256xf32>
    %cst_16 = arith.constant dense<0.000000e+00> : vector<8xf32>
    %66 = vector.multi_reduction <add>, %65, %cst_16 [1] : vector<8x256xf32> to vector<8xf32>
    %67 = vector.shape_cast %66 : vector<8xf32> to vector<8x1xf32>
    %cst_17 = arith.constant 2.560000e+02 : f32
    %68 = vector.broadcast %cst_17 : f32 to vector<8x1xf32>
    %69 = arith.divf %67, %68 : vector<8x1xf32>
    %cst_18 = arith.constant 9.99999974E-6 : f32
    %70 = vector.broadcast %cst_18 : f32 to vector<8x1xf32>
    %71 = arith.addf %69, %70 : vector<8x1xf32>
    %72 = math.rsqrt %71 : vector<8x1xf32>
    %73 = vector.broadcast %72 : vector<8x1xf32> to vector<8x256xf32>
    %74 = arith.mulf %64, %73 : vector<8x256xf32>
    %cst_19 = arith.constant 0.000000e+00 : f32
    %75 = vector.broadcast %cst_19 : f32 to vector<8x256xf32>
    %76 = arith.maximumf %74, %75 : vector<8x256xf32>
    %cst_20 = arith.constant 0.000000e+00 : f32
    %77 = vector.broadcast %cst_20 : f32 to vector<8x17xf32>
    %78 = tpu.concatenate %77, %76, %77 in 1 : vector<8x17xf32>, vector<8x256xf32>, vector<8x17xf32> -> vector<8x290xf32>
    %c0_21 = arith.constant 0 : index
    %c0_22 = arith.constant 0 : index
    %79 = vector.load %arg3[%c0_21, %c0_22] : memref<8x72xf32, #tpu.memory_space<vmem>>, vector<8x72xf32>
    %80 = vector.extract_strided_slice %78 {offsets = [0, 0], sizes = [8, 256], strides = [1, 1]} : vector<8x290xf32> to vector<8x256xf32>
    %cst_23 = arith.constant 0.000000e+00 : f32
    %81 = vector.shape_cast %18 : vector<1x256xi1> to vector<1x256xi1>
    %82 = vector.broadcast %81 : vector<1x256xi1> to vector<8x256xi1>
    %83 = vector.broadcast %cst_23 : f32 to vector<8x256xf32>
    %84 = arith.select %82, %80, %83 : vector<8x256xi1>, vector<8x256xf32>
    %85 = vector.extract_strided_slice %78 {offsets = [0, 1], sizes = [8, 256], strides = [1, 1]} : vector<8x290xf32> to vector<8x256xf32>
    %86 = vector.extract_strided_slice %78 {offsets = [0, 2], sizes = [8, 256], strides = [1, 1]} : vector<8x290xf32> to vector<8x256xf32>
    %cst_24 = arith.constant 0.000000e+00 : f32
    %87 = vector.shape_cast %20 : vector<1x256xi1> to vector<1x256xi1>
    %88 = vector.broadcast %87 : vector<1x256xi1> to vector<8x256xi1>
    %89 = vector.broadcast %cst_24 : f32 to vector<8x256xf32>
    %90 = arith.select %88, %86, %89 : vector<8x256xi1>, vector<8x256xf32>
    %91 = vector.extract_strided_slice %78 {offsets = [0, 16], sizes = [8, 256], strides = [1, 1]} : vector<8x290xf32> to vector<8x256xf32>
    %cst_25 = arith.constant 0.000000e+00 : f32
    %92 = vector.shape_cast %18 : vector<1x256xi1> to vector<1x256xi1>
    %93 = vector.broadcast %92 : vector<1x256xi1> to vector<8x256xi1>
    %94 = vector.broadcast %cst_25 : f32 to vector<8x256xf32>
    %95 = arith.select %93, %91, %94 : vector<8x256xi1>, vector<8x256xf32>
    %96 = vector.extract_strided_slice %78 {offsets = [0, 17], sizes = [8, 256], strides = [1, 1]} : vector<8x290xf32> to vector<8x256xf32>
    %97 = vector.extract_strided_slice %78 {offsets = [0, 18], sizes = [8, 256], strides = [1, 1]} : vector<8x290xf32> to vector<8x256xf32>
    %cst_26 = arith.constant 0.000000e+00 : f32
    %98 = vector.shape_cast %20 : vector<1x256xi1> to vector<1x256xi1>
    %99 = vector.broadcast %98 : vector<1x256xi1> to vector<8x256xi1>
    %100 = vector.broadcast %cst_26 : f32 to vector<8x256xf32>
    %101 = arith.select %99, %97, %100 : vector<8x256xi1>, vector<8x256xf32>
    %102 = vector.extract_strided_slice %78 {offsets = [0, 32], sizes = [8, 256], strides = [1, 1]} : vector<8x290xf32> to vector<8x256xf32>
    %cst_27 = arith.constant 0.000000e+00 : f32
    %103 = vector.shape_cast %18 : vector<1x256xi1> to vector<1x256xi1>
    %104 = vector.broadcast %103 : vector<1x256xi1> to vector<8x256xi1>
    %105 = vector.broadcast %cst_27 : f32 to vector<8x256xf32>
    %106 = arith.select %104, %102, %105 : vector<8x256xi1>, vector<8x256xf32>
    %107 = vector.extract_strided_slice %78 {offsets = [0, 33], sizes = [8, 256], strides = [1, 1]} : vector<8x290xf32> to vector<8x256xf32>
    %108 = vector.extract_strided_slice %78 {offsets = [0, 34], sizes = [8, 256], strides = [1, 1]} : vector<8x290xf32> to vector<8x256xf32>
    %cst_28 = arith.constant 0.000000e+00 : f32
    %109 = vector.shape_cast %20 : vector<1x256xi1> to vector<1x256xi1>
    %110 = vector.broadcast %109 : vector<1x256xi1> to vector<8x256xi1>
    %111 = vector.broadcast %cst_28 : f32 to vector<8x256xf32>
    %112 = arith.select %110, %108, %111 : vector<8x256xi1>, vector<8x256xf32>
    %113 = tpu.concatenate %84, %85, %90, %95, %96, %101, %106, %107, %112 in 0 : vector<8x256xf32>, vector<8x256xf32>, vector<8x256xf32>, vector<8x256xf32>, vector<8x256xf32>, vector<8x256xf32>, vector<8x256xf32>, vector<8x256xf32>, vector<8x256xf32> -> vector<72x256xf32>
    %cst_29 = arith.constant dense<0.000000e+00> : vector<8x256xf32>
    %114 = tpu.matmul %79, %113, %cst_29 {dimension_numbers = #tpu.dot_dimension_numbers<[1], [0], [0], [1], [0, 0, 1, 1], [], []>} : vector<8x72xf32>, vector<72x256xf32>, vector<8x256xf32> -> vector<8x256xf32>
    %cst_30 = arith.constant dense<0.000000e+00> : vector<8xf32>
    %115 = vector.multi_reduction <add>, %114, %cst_30 [1] : vector<8x256xf32> to vector<8xf32>
    %116 = vector.shape_cast %115 : vector<8xf32> to vector<8x1xf32>
    %cst_31 = arith.constant 2.560000e+02 : f32
    %117 = vector.broadcast %cst_31 : f32 to vector<8x1xf32>
    %118 = arith.divf %116, %117 : vector<8x1xf32>
    %119 = vector.broadcast %118 : vector<8x1xf32> to vector<8x256xf32>
    %120 = arith.subf %114, %119 : vector<8x256xf32>
    %121 = arith.mulf %120, %120 : vector<8x256xf32>
    %cst_32 = arith.constant dense<0.000000e+00> : vector<8xf32>
    %122 = vector.multi_reduction <add>, %121, %cst_32 [1] : vector<8x256xf32> to vector<8xf32>
    %123 = vector.shape_cast %122 : vector<8xf32> to vector<8x1xf32>
    %cst_33 = arith.constant 2.560000e+02 : f32
    %124 = vector.broadcast %cst_33 : f32 to vector<8x1xf32>
    %125 = arith.divf %123, %124 : vector<8x1xf32>
    %cst_34 = arith.constant 9.99999974E-6 : f32
    %126 = vector.broadcast %cst_34 : f32 to vector<8x1xf32>
    %127 = arith.addf %125, %126 : vector<8x1xf32>
    %128 = math.rsqrt %127 : vector<8x1xf32>
    %129 = vector.broadcast %128 : vector<8x1xf32> to vector<8x256xf32>
    %130 = arith.mulf %120, %129 : vector<8x256xf32>
    %cst_35 = arith.constant 0.000000e+00 : f32
    %131 = vector.broadcast %cst_35 : f32 to vector<8x256xf32>
    %132 = arith.maximumf %130, %131 : vector<8x256xf32>
    %c0_36 = arith.constant 0 : index
    %c0_37 = arith.constant 0 : index
    %c0_38 = arith.constant 0 : index
    %133 = vector.load %arg4[%c0_36, %c0_37, %c0_38] : memref<1x8x256xf32, #tpu.memory_space<vmem>>, vector<1x8x256xf32>
    %134 = vector.shape_cast %133 : vector<1x8x256xf32> to vector<8x256xf32>
    %135 = vector.shape_cast %132 : vector<8x256xf32> to vector<1x8x256xf32>
    tpu.vector_store %arg4[%c0_36, %c0_37, %c0_38], %135 {strides = array<i32>} : memref<1x8x256xf32, #tpu.memory_space<vmem>>, vector<1x8x256xf32>,
    return
  }
  func.func @transform_0(%arg0: i32) -> (i32, i32, i32) {
    %c0_i32 = arith.constant 0 : i32
    %c0_i32_0 = arith.constant 0 : i32
    %c0_i32_1 = arith.constant 0 : i32
    return %arg0, %c0_i32, %c0_i32_0 : i32, i32, i32
  }
  func.func @transform_1(%arg0: i32) -> (i32, i32) {
    %c0_i32 = arith.constant 0 : i32
    %c0_i32_0 = arith.constant 0 : i32
    %c0_i32_1 = arith.constant 0 : i32
    return %c0_i32, %c0_i32_0 : i32, i32
  }
  func.func @transform_2(%arg0: i32) -> (i32, i32) {
    %c0_i32 = arith.constant 0 : i32
    %c0_i32_0 = arith.constant 0 : i32
    %c0_i32_1 = arith.constant 0 : i32
    return %c0_i32, %c0_i32_0 : i32, i32
  }
  func.func @transform_3(%arg0: i32) -> (i32, i32, i32) {
    %c0_i32 = arith.constant 0 : i32
    %c0_i32_0 = arith.constant 0 : i32
    %c0_i32_1 = arith.constant 0 : i32
    return %arg0, %c0_i32, %c0_i32_0 : i32, i32, i32
  }
}

</mosaic_0001>

<llo_original>
// kernel: conv_block.1
$region0: #{conv_block.1}
  #allocation0 [shape = 'u32[]', space=smem, size = 0x4, offset = 0x4, fixed_abs, tag = 'smem constant byte address 0x4 - core index']
  #allocation1 [shape = 'u32[144,128]{1,0:T(1,128)}', space=vmem, size = 0x12000, scoped, tag = 'internal scratch']
  %s0 = inlined_call_operand.vmem [shape: f32[2,4,290], index: 0, kind: input, shape index: {}]
  %s1 = inlined_call_operand.vmem [shape: f32[8,36], index: 1, kind: input, shape index: {}]
  %s2 = inlined_call_operand.vmem [shape: f32[8,72], index: 2, kind: input, shape index: {}]
  %s3 = inlined_call_operand.vmem [shape: f32[2,8,256], index: 3, kind: output, shape index: {}]
  %s4 = sld [smem:[#allocation0]]
  $region45: #{conv_block.1} parent=0
    _
  %s6 = ssub.s32 1, %s4
  %s7 = scalar_select 0, %s6, %s4
  loop: start=0, step=1, limit=4
  $region2: #{conv_block.1} parent=0 // loop_pre_header
    _
  $region3: #{conv_block.1} parent=0 // loop_header
    %s9 = sphi 0, %s13
    %p10 = scmp.ge.s32.totalorder %s9, 4
    %s19 = sphi 0, %s21
    %s22 = sphi 0, %s19
    %s23 = sphi 0, %s22
    %s39 = sphi 0, %s23
    %s43 = sphi 0, %s43
    %s45 = sphi 0, %s43
    %s46 = sphi 0, %s45
    %s60 = sphi 0, %s46
    %s64 = sphi 0, %s64
    %s66 = sphi 0, %s64
    %s67 = sphi 0, %s66
    %s81 = sphi 0, %s67
    %s87 = sphi 0, %s89
    %s90 = sphi 0, %s87
    %s91 = sphi 0, %s90
    %s107 = sphi 0, %s91
  $region4: #{conv_block.1} parent=0 // loop_header_branch
    %12 = sbr.rel (%p10) target = $region8
  $region5: #{conv_block.1} parent=0 // loop_body
    %s14 = ssub.s32 %s9, 1
    %s15 = ssub.s32 %s9, 2
    %s16 = sadd.s32 %s9, 1
    %s17 = ssub.s32 %s9, %s16
    %p18 = scmp.eq.s32.totalorder %s17, 0
    %s20 = sadd.s32 %s19, 1
    %s21 = scalar_select %p18, %s19, %s20
    %p24 = pneg %p18
    %p25 = scmp.eq.s32.totalorder %s9, 1
    %p26 = por %p24, %p25
    %p27 = scmp.ne.s32.totalorder %s19, %s22
    %p28 = scmp.eq.s32.totalorder %s9, 0
    %p29 = por %p27, %p28
    %p30 = scmp.ne.s32.totalorder %s19, %s22
    %p31 = scmp.eq.s32.totalorder %s14, 1
    %p32 = por %p30, %p31
    %p33 = scmp.ne.s32.totalorder %s22, %s23
    %p34 = scmp.eq.s32.totalorder %s14, 0
    %p35 = por %p33, %p34
    %p36 = scmp.ne.s32.totalorder %s22, %s23
    %p37 = scmp.eq.s32.totalorder %s15, 1
    %p38 = por %p36, %p37
    %p40 = scmp.ne.s32.totalorder %s23, %s39
    %p41 = scmp.eq.s32.totalorder %s15, 0
    %p42 = por %p40, %p41
    %s44 = sadd.s32 %s43, 1
    %p47 = scmp.eq.s32.totalorder %s9, 1
    %p48 = scmp.ne.s32.totalorder %s43, %s45
    %p49 = scmp.eq.s32.totalorder %s9, 0
    %p50 = por %p48, %p49
    %p51 = scmp.ne.s32.totalorder %s43, %s45
    %p52 = scmp.eq.s32.totalorder %s14, 1
    %p53 = por %p51, %p52
    %p54 = scmp.ne.s32.totalorder %s45, %s46
    %p55 = scmp.eq.s32.totalorder %s14, 0
    %p56 = por %p54, %p55
    %p57 = scmp.ne.s32.totalorder %s45, %s46
    %p58 = scmp.eq.s32.totalorder %s15, 1
    %p59 = por %p57, %p58
    %p61 = scmp.ne.s32.totalorder %s46, %s60
    %p62 = scmp.eq.s32.totalorder %s15, 0
    %p63 = por %p61, %p62
    %s65 = sadd.s32 %s64, 1
    %p68 = scmp.eq.s32.totalorder %s9, 1
    %p69 = scmp.ne.s32.totalorder %s64, %s66
    %p70 = scmp.eq.s32.totalorder %s9, 0
    %p71 = por %p69, %p70
    %p72 = scmp.ne.s32.totalorder %s64, %s66
    %p73 = scmp.eq.s32.totalorder %s14, 1
    %p74 = por %p72, %p73
    %p75 = scmp.ne.s32.totalorder %s66, %s67
    %p76 = scmp.eq.s32.totalorder %s14, 0
    %p77 = por %p75, %p76
    %p78 = scmp.ne.s32.totalorder %s66, %s67
    %p79 = scmp.eq.s32.totalorder %s15, 1
    %p80 = por %p78, %p79
    %p82 = scmp.ne.s32.totalorder %s67, %s81
    %p83 = scmp.eq.s32.totalorder %s15, 0
    %p84 = por %p82, %p83
    %s85 = ssub.s32 %s9, %s16
    %p86 = scmp.eq.s32.totalorder %s85, 0
    %s88 = sadd.s32 %s87, 1
    %s89 = scalar_select %p86, %s87, %s88
    %p92 = pneg %p86
    %p93 = scmp.eq.s32.totalorder %s9, 1
    %p94 = por %p92, %p93
    %p95 = scmp.ne.s32.totalorder %s87, %s90
    %p96 = scmp.eq.s32.totalorder %s9, 0
    %p97 = por %p95, %p96
    %p98 = scmp.ne.s32.totalorder %s87, %s90
    %p99 = scmp.eq.s32.totalorder %s14, 1
    %p100 = por %p98, %p99
    %p101 = scmp.ne.s32.totalorder %s90, %s91
    %p102 = scmp.eq.s32.totalorder %s14, 0
    %p103 = por %p101, %p102
    %p104 = scmp.ne.s32.totalorder %s90, %s91
    %p105 = scmp.eq.s32.totalorder %s15, 1
    %p106 = por %p104, %p105
    %p108 = scmp.ne.s32.totalorder %s91, %s107
    %p109 = scmp.eq.s32.totalorder %s15, 0
    %p110 = por %p108, %p109
    %p111 = scmp.le.s32.totalorder 1, %s9
    %p112 = scmp.lt.s32.totalorder %s9, 3
    %p113 = pnand %p111, %p112
    %p114 = pneg %p113
    // Predicated region
    $region9: #{conv_block.1} parent=5 // pred_check
      _
    $region10: #{conv_block.1} parent=5 // pred_check_branch
      %116 = sbr.rel (%p113) target = $region12
    $region11: #{conv_block.1} parent=5 // pred_region
      %s117 = ssub.s32 %s9, 1
      // Predicated region
      $region13: #{conv_block.1} parent=11 // pred_check
        %p118 = pneg %p56
      $region14: #{conv_block.1} parent=11 // pred_check_branch
        %120 = sbr.rel (%p118) target = $region16
      $region15: #{conv_block.1} parent=11 // pred_region
        _
      $region16: #{conv_block.1} parent=11 // pred_fallthru
        _
      // Predicated region
      $region17: #{conv_block.1} parent=11 // pred_check
        %p121 = pneg %p77
      $region18: #{conv_block.1} parent=11 // pred_check_branch
        %123 = sbr.rel (%p121) target = $region20
      $region19: #{conv_block.1} parent=11 // pred_region
        _
      $region20: #{conv_block.1} parent=11 // pred_fallthru
        _
    $region12: #{conv_block.1} parent=5 // pred_fallthru
      _
    %p124 = scmp.lt.s32.totalorder %s9, 2
    // Predicated region
    $region21: #{conv_block.1} parent=5 // pred_check
      %p125 = pneg %p124
    $region22: #{conv_block.1} parent=5 // pred_check_branch
      %127 = sbr.rel (%p125) target = $region24
    $region23: #{conv_block.1} parent=5 // pred_region
      // Predicated region
      $region25: #{conv_block.1} parent=23 // pred_check
        %p128 = pneg %p29
      $region26: #{conv_block.1} parent=23 // pred_check_branch
        %130 = sbr.rel (%p128) target = $region28
      $region27: #{conv_block.1} parent=23 // pred_region
        %p131 = scmp.lt.s32.totalorder %s9, 1
        %s132 = scalar_select %p131, %s9, 1
        %s133 = smul.addr %s132, 3
        %s134 = smul.addr %s133, 4
        %s135 = scalar_lea.vmem %s0, %s134
      $region28: #{conv_block.1} parent=23 // pred_fallthru
        _
    $region24: #{conv_block.1} parent=5 // pred_fallthru
      _
    %p136 = scmp.le.s32.totalorder 1, %s9
    %p137 = scmp.lt.s32.totalorder %s9, 3
    %p138 = pnand %p136, %p137
    %p139 = pneg %p138
    // Predicated region
    $region29: #{conv_block.1} parent=5 // pred_check
      _
    $region30: #{conv_block.1} parent=5 // pred_check_branch
      %141 = sbr.rel (%p138) target = $region32
    $region31: #{conv_block.1} parent=5 // pred_region
      %s142 = ssub.s32 %s9, 1
      %p143 = scmp.lt.s32.totalorder %s14, 1
      %s144 = scalar_select %p143, %s14, 1
      %s145 = smul.addr %s144, 3
      %s146 = smul.addr %s145, 4
      %s147 = scalar_lea.vmem %s0, %s146
      %p148 = pneg %p35
      %p149 = pneg %p32
      %p150 = pneg %p56
      %p151 = pneg %p53
      %p152 = pneg %p77
      %p153 = pneg %p74
      %p154 = pneg %p103
      %p155 = pneg %p100
      %p156 = scmp.lt.s32.totalorder %s14, 1
      %s157 = scalar_select %p156, %s14, 1
      %s158 = smul.addr %s157, 2
      %s159 = smul.addr %s158, 8
      %s160 = scalar_lea.vmem %s3, %s159
      %p161 = scmp.lt.s32.totalorder %s14, 1
      %s162 = scalar_select %p161, %s14, 1
      %s163 = smul.addr %s162, 3
      %s164 = smul.addr %s163, 4
      %s165 = scalar_lea.vmem %s0, %s164
      %p166 = scmp.lt.s32.totalorder %s14, 1
      %s167 = scalar_select %p166, %s14, 1
      %s168 = smul.addr %s167, 2
      %s169 = smul.addr %s168, 8
      %s170 = scalar_lea.vmem %s3, %s169
      %v171 = vlaneseq
      %v172 = vand.u32 %v171, 127
      %v173 = vadd.s32 %v172, 128
      %vm174 = vcmp.lt.s32.totalorder %v172, 0
      %v175 = vsub.s32 0, %v172
      %v176 = vsel %vm174, %v175, %v172
      %v177 = vshrl.u32 %v176, 4
      %v178 = vand.u32 %v176, 15
      %v179 = vsub.s32 0, %v178
      %v180 = vsel %vm174, %v179, %v178
      %vm181 = vcmp.lt.s32.totalorder %v173, 0
      %v182 = vsub.s32 0, %v173
      %v183 = vsel %vm181, %v182, %v173
      %v184 = vshrl.u32 %v183, 4
      %v185 = vand.u32 %v183, 15
      %v186 = vsub.s32 0, %v185
      %v187 = vsel %vm181, %v186, %v185
      %vm188 = vcmp.ne.s32.totalorder %v180, 0
      %vm189 = vcmp.ne.s32.totalorder %v187, 0
      %vm190 = vcmp.lt.s32.totalorder %v180, 0
      %vm191 = vcmp.lt.s32.totalorder %v187, 0
      %vm192 = vmand %vm190, %vm188
      %vm193 = vmand %vm191, %vm189
      %v194 = vadd.s32 %v180, 16
      %v195 = vadd.s32 %v187, 16
      %v196 = vsel %vm192, %v194, %v180
      %v197 = vsel %vm193, %v195, %v187
      %vm198 = vcmp.ne.s32.totalorder %v196, 0
      %vm199 = vcmp.ne.s32.totalorder %v197, 0
      %vm200 = vcmp.ne.s32.totalorder %v196, 15
      %vm201 = vcmp.ne.s32.totalorder %v197, 15
      %v202 = vld [vmem:[%s165] sm:$0xff]
      %v203 = vld [vmem:[%s165 + $0x8] sm:$0xf]
      %v204 = vld [vmem:[%s1] sm:$0xff]
      %v205 = vsel %vm198, 1, 0
      %v206 = vsel %vm199, 1, 0
      %vm207 = vcmp.eq.s32.totalorder %v205, 1
      %vm208 = vcmp.eq.s32.totalorder %v206, 1
      %v210 = vcombine.high %v202, %v202
      %v212 = vsel %vm207, %v202, 0.0
      %v213 = vsel %vm208, %v210, 0.0
      %v214 = vsel %vm200, 1, 0
      %v215 = vsel %vm201, 1, 0
      %vm216 = vcmp.eq.s32.totalorder %v214, 1
      %vm217 = vcmp.eq.s32.totalorder %v215, 1
      %219 = vrot.lane.b32.xlu0 %v202, 126
      %v220 = vpop.permute.xlu0 %219
      %221 = vrot.lane.b32.xlu0 %v210, 126
      %v222 = vpop.permute.xlu0 %221
      %223 = vrot.lane.b32.xlu0 %v203, 126
      %v224 = vpop.permute.xlu0 %223
      %vm225 = vcmask 1031168
      %v226 = vsel %vm225, %v220, %v222
      %v227 = vsel %vm225, %v222, %v224
      %v230 = vsel %vm216, %v226, 0.0
      %v231 = vsel %vm217, %v227, 0.0
      %232 = vrot.lane.b32.xlu0 %v202, 112
      %v233 = vpop.permute.xlu0 %232
      %234 = vrot.lane.b32.xlu0 %v210, 112
      %v235 = vpop.permute.xlu0 %234
      %236 = vrot.lane.b32.xlu0 %v203, 112
      %v237 = vpop.permute.xlu0 %236
      %vm238 = vcmask 916480
      %v239 = vsel %vm238, %v233, %v235
      %v240 = vsel %vm238, %v235, %v237
      %v243 = vsel %vm207, %v239, 0.0
      %v244 = vsel %vm208, %v240, 0.0
      %245 = vrot.lane.b32.xlu0 %v202, 110
      %v246 = vpop.permute.xlu0 %245
      %247 = vrot.lane.b32.xlu0 %v210, 110
      %v248 = vpop.permute.xlu0 %247
      %249 = vrot.lane.b32.xlu0 %v203, 110
      %v250 = vpop.permute.xlu0 %249
      %vm251 = vcmask 900096
      %v252 = vsel %vm251, %v246, %v248
      %v253 = vsel %vm251, %v248, %v250
      %v256 = vsel %vm216, %v252, 0.0
      %v257 = vsel %vm217, %v253, 0.0
      %258 = vrot.lane.b32.xlu0 %v202, 96
      %v259 = vpop.permute.xlu0 %258
      %260 = vrot.lane.b32.xlu0 %v210, 96
      %v261 = vpop.permute.xlu0 %260
      %262 = vrot.lane.b32.xlu0 %v203, 96
      %v263 = vpop.permute.xlu0 %262
      %vm264 = vcmask 785408
      %v265 = vsel %vm264, %v259, %v261
      %v266 = vsel %vm264, %v261, %v263
      %v269 = vsel %vm207, %v265, 0.0
      %v270 = vsel %vm208, %v266, 0.0
      %271 = vrot.lane.b32.xlu0 %v202, 94
      %v272 = vpop.permute.xlu0 %271
      %273 = vrot.lane.b32.xlu0 %v210, 94
      %v274 = vpop.permute.xlu0 %273
      %275 = vrot.lane.b32.xlu0 %v203, 94
      %v276 = vpop.permute.xlu0 %275
      %vm277 = vcmask 769024
      %v278 = vsel %vm277, %v272, %v274
      %v279 = vsel %vm277, %v274, %v276
      %v282 = vsel %vm216, %v278, 0.0
      %v283 = vsel %vm217, %v279, 0.0
      %v284 = vcombine.low %v202, %v202
      %v285 = vcombine.low %v203, %v203
      %286 = vrot.lane.b32.xlu0 %v284, 127
      %v287 = vpop.permute.xlu0 %286
      %288 = vrot.lane.b32.xlu0 %v202, 127
      %v289 = vpop.permute.xlu0 %288
      %290 = vrot.lane.b32.xlu0 %v285, 127
      %v291 = vpop.permute.xlu0 %290
      %vm292 = vcmask 1039360
      %v293 = vsel %vm292, %v287, %v289
      %v294 = vsel %vm292, %v289, %v291
      %v299 = vrot.slane %v243, 4
      %v300 = vrot.slane %v244, 4
      %303 = vrot.lane.b32.xlu0 %v202, 111
      %v304 = vpop.permute.xlu0 %303
      %305 = vrot.lane.b32.xlu0 %v210, 111
      %v306 = vpop.permute.xlu0 %305
      %307 = vrot.lane.b32.xlu0 %v203, 111
      %v308 = vpop.permute.xlu0 %307
      %vm309 = vcmask 908288
      %v310 = vsel %vm309, %v304, %v306
      %v311 = vsel %vm309, %v306, %v308
      %v316 = vrot.slane %v256, 4
      %v317 = vrot.slane %v257, 4
      %320 = vrot.lane.b32.xlu0 %v284, 95
      %v321 = vpop.permute.xlu0 %320
      %322 = vrot.lane.b32.xlu0 %v202, 95
      %v323 = vpop.permute.xlu0 %322
      %324 = vrot.lane.b32.xlu0 %v285, 95
      %v325 = vpop.permute.xlu0 %324
      %vm326 = vcmask 777216
      %v327 = vsel %vm326, %v321, %v323
      %v328 = vsel %vm326, %v323, %v325
      %vm331 = vcmask 1043456
      %v332 = vsel %vm331, %v212, %v293
      %v333 = vsel %vm331, %v213, %v294
      %v334 = vsel %vm331, %v230, %v299
      %v335 = vsel %vm331, %v231, %v300
      %v336 = vsel %vm331, %v310, %v316
      %v337 = vsel %vm331, %v311, %v317
      %v338 = vsel %vm331, %v269, %v327
      %v339 = vsel %vm331, %v270, %v328
      %vm340 = vcmask 293888
      %v342 = vsel %vm340, %v204, 0
      %v345 = vsel %vm331, %v282, 0
      %v348 = vsel %vm331, %v283, 0
      %350 = vmatprep.subr.mxu0 0.0
      %351 = vmatpush1.msra.mxu0 0.0
      %352 = vmatprep.subr.mxu0 0.0
      %353 = vmatpush1.msra.mxu0 0.0
      %354 = vmatprep.subr.mxu0 0.0
      %355 = vmatpush1.msra.mxu0 0.0
      %356 = vmatprep.subr.mxu0 0.0
      %357 = vmatpush1.msra.mxu0 0.0
      %358 = vmatprep.subr.mxu0 0.0
      %359 = vmatpush1.msra.mxu0 0.0
      %360 = vmatprep.subr.mxu0 0.0
      %361 = vmatpush1.msra.mxu0 0.0
      %362 = vmatprep.subr.mxu0 0.0
      %363 = vmatpush1.msra.mxu0 0.0
      %364 = vmatprep.subr.mxu0 0.0
      %365 = vmatpush1.msra.mxu0 0.0
      %366 = vmatprep.subr.mxu0 0.0
      %367 = vmatpush1.msra.mxu0 0.0
      %368 = vmatprep.subr.mxu0 0.0
      %369 = vmatpush1.msra.mxu0 0.0
      %370 = vmatprep.subr.mxu0 0.0
      %371 = vmatpush1.msra.mxu0 0.0
      %372 = vmatprep.subr.mxu0 %v348
      %373 = vmatpush1.msra.mxu0 %v345
      %374 = vmatprep.subr.mxu0 %v339
      %375 = vmatpush1.msra.mxu0 %v338
      %376 = vmatprep.subr.mxu0 %v337
      %377 = vmatpush1.msra.mxu0 %v336
      %378 = vmatprep.subr.mxu0 %v335
      %379 = vmatpush1.msra.mxu0 %v334
      %380 = vmatprep.subr.mxu0 %v333
      %381 = vmatpush1.msra.mxu0 %v332
      %382 = vmatprep.subr.mxu0 0.0
      %383 = vmatpush2.msra.mxu0 0.0
      %384 = vmatprep.subr.mxu0 0.0
      %385 = vmatpush2.msra.mxu0 0.0
      %386 = vmatprep.subr.mxu0 0.0
      %387 = vmatpush2.msra.mxu0 0.0
      %388 = vmatprep.subr.mxu0 0.0
      %389 = vmatpush2.msra.mxu0 0.0
      %390 = vmatprep.subr.mxu0 0.0
      %391 = vmatpush2.msra.mxu0 0.0
      %392 = vmatprep.subr.mxu0 0.0
      %393 = vmatpush2.msra.mxu0 0.0
      %394 = vmatprep.subr.mxu0 0.0
      %395 = vmatpush2.msra.mxu0 0.0
      %396 = vmatprep.subr.mxu0 0.0
      %397 = vmatpush2.msra.mxu0 0.0
      %398 = vmatprep.subr.mxu0 0.0
      %399 = vmatpush2.msra.mxu0 0.0
      %400 = vmatprep.subr.mxu0 0.0
      %401 = vmatpush2.msra.mxu0 0.0
      %402 = vmatprep.subr.mxu0 0.0
      %403 = vmatpush2.msra.mxu0 0.0
      %404 = vmatprep.subr.mxu0 0.0
      %405 = vmatpush2.msra.mxu0 0.0
      %406 = vmatprep.subr.mxu0 0.0
      %407 = vmatpush2.msra.mxu0 0.0
      %408 = vmatprep.subr.mxu0 0.0
      %409 = vmatpush2.msra.mxu0 0.0
      %410 = vmatprep.subr.mxu0 0.0
      %411 = vmatpush2.msra.mxu0 0.0
      %412 = vmatprep.subr.mxu0 0.0
      %413 = vmatpush2.msra.mxu0 0.0
      %414 = vmatprep.mubr.f32.mxu0 0.0
      %415 = vmatmul.mubr.f32.gmra.mxu0 %v342
      %v416 = vpop.f32.mrf.mxu0
      %v417 = vadd.f32 0.0, %v416
      %v418 = vpop.f32.mrf.mxu0
      %v419 = vadd.f32 0.0, %v418
      %420 = vdwg.mxu0
      %v421 = vadd.f32 %v417, %v419
      %422 = vadd.xlane.f32.xlu0 %v421
      %v423 = vpop.xlane.xlu0 %422
      %v424 = vrcp.pop 256.0
      %v425 = vmul.f32 %v423, %v424
      %v426 = vsub.f32 %v417, %v425
      %v427 = vsub.f32 %v419, %v425
      %v428 = vmul.f32 %v426, %v426
      %v429 = vmul.f32 %v427, %v427
      %v430 = vadd.f32 %v428, %v429
      %431 = vadd.xlane.f32.xlu0 %v430
      %v432 = vpop.xlane.xlu0 %431
      %v433 = vmul.f32 %v432, %v424
      %v434 = vadd.f32 %v433, 1e-05
      %v435 = vrsqrt.pop %v434
      %v436 = vmul.f32 %v426, %v435
      %v437 = vmul.f32 %v427, %v435
      %v438 = vmax.f32 %v436, 0.0
      %v439 = vmax.f32 %v437, 0.0
      %442 = vrot.lane.b32.xlu0 %v438, 17
      %v443 = vpop.permute.xlu0 %442
      %444 = vrot.lane.b32.xlu0 %v439, 17
      %v445 = vpop.permute.xlu0 %444
      %vm446 = vcmask 138240
      %v447 = vsel %vm446, %v443, %v445
      %v451 = vsel %vm446, 0.0, %v443
      %v452 = vsel %vm446, %v445, 0.0
      %v453 = vld [vmem:[%s2] sm:$0xff]
      %v454 = vsel %vm207, %v451, 0.0
      %v455 = vsel %vm208, %v447, 0.0
      %458 = vrot.lane.b32.xlu0 %v451, 126
      %v459 = vpop.permute.xlu0 %458
      %460 = vrot.lane.b32.xlu0 %v447, 126
      %v461 = vpop.permute.xlu0 %460
      %462 = vrot.lane.b32.xlu0 %v452, 126
      %v463 = vpop.permute.xlu0 %462
      %v464 = vsel %vm225, %v459, %v461
      %v465 = vsel %vm225, %v461, %v463
      %v468 = vsel %vm216, %v464, 0.0
      %v469 = vsel %vm217, %v465, 0.0
      %470 = vrot.lane.b32.xlu0 %v451, 112
      %v471 = vpop.permute.xlu0 %470
      %472 = vrot.lane.b32.xlu0 %v447, 112
      %v473 = vpop.permute.xlu0 %472
      %474 = vrot.lane.b32.xlu0 %v452, 112
      %v475 = vpop.permute.xlu0 %474
      %v476 = vsel %vm238, %v471, %v473
      %v477 = vsel %vm238, %v473, %v475
      %v480 = vsel %vm207, %v476, 0.0
      %v481 = vsel %vm208, %v477, 0.0
      %482 = vrot.lane.b32.xlu0 %v451, 110
      %v483 = vpop.permute.xlu0 %482
      %484 = vrot.lane.b32.xlu0 %v447, 110
      %v485 = vpop.permute.xlu0 %484
      %486 = vrot.lane.b32.xlu0 %v452, 110
      %v487 = vpop.permute.xlu0 %486
      %v488 = vsel %vm251, %v483, %v485
      %v489 = vsel %vm251, %v485, %v487
      %v492 = vsel %vm216, %v488, 0.0
      %v493 = vsel %vm217, %v489, 0.0
      %494 = vrot.lane.b32.xlu0 %v451, 96
      %v495 = vpop.permute.xlu0 %494
      %496 = vrot.lane.b32.xlu0 %v447, 96
      %v497 = vpop.permute.xlu0 %496
      %498 = vrot.lane.b32.xlu0 %v452, 96
      %v499 = vpop.permute.xlu0 %498
      %v500 = vsel %vm264, %v495, %v497
      %v501 = vsel %vm264, %v497, %v499
      %v504 = vsel %vm207, %v500, 0.0
      %v505 = vsel %vm208, %v501, 0.0
      %506 = vrot.lane.b32.xlu0 %v451, 94
      %v507 = vpop.permute.xlu0 %506
      %508 = vrot.lane.b32.xlu0 %v447, 94
      %v509 = vpop.permute.xlu0 %508
      %510 = vrot.lane.b32.xlu0 %v452, 94
      %v511 = vpop.permute.xlu0 %510
      %v512 = vsel %vm277, %v507, %v509
      %v513 = vsel %vm277, %v509, %v511
      %v516 = vsel %vm216, %v512, 0.0
      %v517 = vsel %vm217, %v513, 0.0
      %518 = vrot.lane.b32.xlu0 %v451, 127
      %v519 = vpop.permute.xlu0 %518
      %520 = vrot.lane.b32.xlu0 %v447, 127
      %v521 = vpop.permute.xlu0 %520
      %522 = vrot.lane.b32.xlu0 %v452, 127
      %v523 = vpop.permute.xlu0 %522
      %v524 = vsel %vm292, %v519, %v521
      %v525 = vsel %vm292, %v521, %v523
      %528 = vrot.lane.b32.xlu0 %v451, 111
      %v529 = vpop.permute.xlu0 %528
      %530 = vrot.lane.b32.xlu0 %v447, 111
      %v531 = vpop.permute.xlu0 %530
      %532 = vrot.lane.b32.xlu0 %v452, 111
      %v533 = vpop.permute.xlu0 %532
      %v534 = vsel %vm309, %v529, %v531
      %v535 = vsel %vm309, %v531, %v533
      %538 = vrot.lane.b32.xlu0 %v451, 95
      %v539 = vpop.permute.xlu0 %538
      %540 = vrot.lane.b32.xlu0 %v447, 95
      %v541 = vpop.permute.xlu0 %540
      %542 = vrot.lane.b32.xlu0 %v452, 95
      %v543 = vpop.permute.xlu0 %542
      %v544 = vsel %vm326, %v539, %v541
      %v545 = vsel %vm326, %v541, %v543
      %vm548 = vcmask 588800
      %v550 = vsel %vm548, %v453, 0
      %552 = vmatprep.subr.mxu0 0.0
      %553 = vmatpush1.msra.mxu0 0.0
      %554 = vmatprep.subr.mxu0 0.0
      %555 = vmatpush1.msra.mxu0 0.0
      %556 = vmatprep.subr.mxu0 0.0
      %557 = vmatpush1.msra.mxu0 0.0
      %558 = vmatprep.subr.mxu0 0.0
      %559 = vmatpush1.msra.mxu0 0.0
      %560 = vmatprep.subr.mxu0 0.0
      %561 = vmatpush1.msra.mxu0 0.0
      %562 = vmatprep.subr.mxu0 0.0
      %563 = vmatpush1.msra.mxu0 0.0
      %564 = vmatprep.subr.mxu0 0.0
      %565 = vmatpush1.msra.mxu0 0.0
      %566 = vmatprep.subr.mxu0 %v517
      %567 = vmatpush1.msra.mxu0 %v516
      %568 = vmatprep.subr.mxu0 %v545
      %569 = vmatpush1.msra.mxu0 %v544
      %570 = vmatprep.subr.mxu0 %v505
      %571 = vmatpush1.msra.mxu0 %v504
      %572 = vmatprep.subr.mxu0 %v493
      %573 = vmatpush1.msra.mxu0 %v492
      %574 = vmatprep.subr.mxu0 %v535
      %575 = vmatpush1.msra.mxu0 %v534
      %576 = vmatprep.subr.mxu0 %v481
      %577 = vmatpush1.msra.mxu0 %v480
      %578 = vmatprep.subr.mxu0 %v469
      %579 = vmatpush1.msra.mxu0 %v468
      %580 = vmatprep.subr.mxu0 %v525
      %581 = vmatpush1.msra.mxu0 %v524
      %582 = vmatprep.subr.mxu0 %v455
      %583 = vmatpush1.msra.mxu0 %v454
      %584 = vmatprep.subr.mxu0 0.0
      %585 = vmatpush2.msra.mxu0 0.0
      %586 = vmatprep.subr.mxu0 0.0
      %587 = vmatpush2.msra.mxu0 0.0
      %588 = vmatprep.subr.mxu0 0.0
      %589 = vmatpush2.msra.mxu0 0.0
      %590 = vmatprep.subr.mxu0 0.0
      %591 = vmatpush2.msra.mxu0 0.0
      %592 = vmatprep.subr.mxu0 0.0
      %593 = vmatpush2.msra.mxu0 0.0
      %594 = vmatprep.subr.mxu0 0.0
      %595 = vmatpush2.msra.mxu0 0.0
      %596 = vmatprep.subr.mxu0 0.0
      %597 = vmatpush2.msra.mxu0 0.0
      %598 = vmatprep.subr.mxu0 0.0
      %599 = vmatpush2.msra.mxu0 0.0
      %600 = vmatprep.subr.mxu0 0.0
      %601 = vmatpush2.msra.mxu0 0.0
      %602 = vmatprep.subr.mxu0 0.0
      %603 = vmatpush2.msra.mxu0 0.0
      %604 = vmatprep.subr.mxu0 0.0
      %605 = vmatpush2.msra.mxu0 0.0
      %606 = vmatprep.subr.mxu0 0.0
      %607 = vmatpush2.msra.mxu0 0.0
      %608 = vmatprep.subr.mxu0 0.0
      %609 = vmatpush2.msra.mxu0 0.0
      %610 = vmatprep.subr.mxu0 0.0
      %611 = vmatpush2.msra.mxu0 0.0
      %612 = vmatprep.subr.mxu0 0.0
      %613 = vmatpush2.msra.mxu0 0.0
      %614 = vmatprep.subr.mxu0 0.0
      %615 = vmatpush2.msra.mxu0 0.0
      %616 = vmatprep.mubr.f32.mxu0 0.0
      %617 = vmatmul.mubr.f32.gmra.mxu0 %v550
      %v618 = vpop.f32.mrf.mxu0
      %v619 = vadd.f32 0.0, %v618
      %v620 = vpop.f32.mrf.mxu0
      %v621 = vadd.f32 0.0, %v620
      %622 = vdwg.mxu0
      %v623 = vadd.f32 %v619, %v621
      %624 = vadd.xlane.f32.xlu0 %v623
      %v625 = vpop.xlane.xlu0 %624
      %v626 = vmul.f32 %v625, %v424
      %v627 = vsub.f32 %v619, %v626
      %v628 = vsub.f32 %v621, %v626
      %v629 = vmul.f32 %v627, %v627
      %v630 = vmul.f32 %v628, %v628
      %v631 = vadd.f32 %v629, %v630
      %632 = vadd.xlane.f32.xlu0 %v631
      %v633 = vpop.xlane.xlu0 %632
      %v634 = vmul.f32 %v633, %v424
      %v635 = vadd.f32 %v634, 1e-05
      %v636 = vrsqrt.pop %v635
      %v637 = vmul.f32 %v627, %v636
      %v638 = vmul.f32 %v628, %v636
      %v639 = vmax.f32 %v637, 0.0
      %v640 = vmax.f32 %v638, 0.0
      %641 = vst [vmem:[%s170] sm:$0xff] %v639
      %642 = vst [vmem:[%s170 + $0x8] sm:$0xff] %v640
      %p643 = scmp.lt.s32.totalorder %s14, 1
      %s644 = scalar_select %p643, %s14, 1
      %s645 = smul.addr %s644, 2
      %s646 = smul.addr %s645, 8
      %s647 = scalar_lea.vmem %s3, %s646
      // Predicated region
      $region33: #{conv_block.1} parent=31 // pred_check
        %p648 = pneg %p100
      $region34: #{conv_block.1} parent=31 // pred_check_branch
        %650 = sbr.rel (%p648) target = $region36
      $region35: #{conv_block.1} parent=31 // pred_region
        _
      $region36: #{conv_block.1} parent=31 // pred_fallthru
        _
    $region32: #{conv_block.1} parent=5 // pred_fallthru
      _
    %p651 = scmp.le.s32.totalorder 2, %s9
    // Predicated region
    $region37: #{conv_block.1} parent=5 // pred_check
      %p652 = pneg %p651
    $region38: #{conv_block.1} parent=5 // pred_check_branch
      %654 = sbr.rel (%p652) target = $region40
    $region39: #{conv_block.1} parent=5 // pred_region
      %s655 = ssub.s32 %s9, 2
      // Predicated region
      $region41: #{conv_block.1} parent=39 // pred_check
        %p656 = pneg %p106
      $region42: #{conv_block.1} parent=39 // pred_check_branch
        %658 = sbr.rel (%p656) target = $region44
      $region43: #{conv_block.1} parent=39 // pred_region
        %p659 = scmp.lt.s32.totalorder %s15, 1
        %s660 = scalar_select %p659, %s15, 1
        %s661 = smul.addr %s660, 2
        %s662 = smul.addr %s661, 8
        %s663 = scalar_lea.vmem %s3, %s662
      $region44: #{conv_block.1} parent=39 // pred_fallthru
        _
    $region40: #{conv_block.1} parent=5 // pred_fallthru
      _
  $region6: #{conv_block.1} parent=0 // loop_footer
    %s13 = sadd.s32 1, %s9
  $region7: #{conv_block.1} parent=0 // loop_footer_branch
    %8 = sbr.rel target = $region3
  $region8: #{conv_block.1} parent=0 // loop_exit
    _

</llo_original>
